<compile_context>
chip_gen: v7x
topology: tpu7x:2x2x1
jax: 0.10.0
libtpu: 0.0.40
codegen_flags: <defaults>
</compile_context>

<pallas_src>
import functools

import jax
import jax.numpy as jnp
from jax import lax
from jax.experimental import pallas as pl
from jax.experimental.pallas import tpu as pltpu


def _round_up(x, m):
    return (x + m - 1) // m * m


# -----------------------------------------------------------------------------
# Kernel 1: fully fused GatedGCN layer.
# -----------------------------------------------------------------------------
def _gcn_layer_kernel(h_ref, w_ref, b_ref, ce_ref, srcc_ref, dstc_ref,
                      dstr_ref, g_ref, bb_ref, o_ref):
    h = h_ref[...]                                             # (N, H) f32
    n, hd = h.shape
    # Fused A|B|D|E projection -> lane-dense (N, 4H) slab (4H == 128).
    proj = jnp.dot(h.astype(jnp.bfloat16), w_ref[...],
                   preferred_element_type=jnp.float32) + b_ref[...]
    e = srcc_ref.shape[0]
    lane_n = lax.broadcasted_iota(jnp.int32, (e, n), 1)
    s_src = (lane_n == srcc_ref[...]).astype(jnp.float32)      # (E, N) one-hot
    s_dst = (lane_n == dstc_ref[...]).astype(jnp.float32)
    sub_n = lax.broadcasted_iota(jnp.int32, (n, e), 0)
    s_dst_t = (sub_n == dstr_ref[...]).astype(jnp.float32)     # (N, E) one-hot^T
    # Edge gathers as one-hot MXU matmuls (f32 -> exact row picks).
    p_src = jnp.dot(s_src, proj, preferred_element_type=jnp.float32)   # (E,4H)
    p_dst = jnp.dot(s_dst, proj, preferred_element_type=jnp.float32)
    ah = proj[:, 0:hd]
    bh_src = p_src[:, hd:2 * hd]
    dh_src = p_src[:, 2 * hd:3 * hd]
    eh_dst = p_dst[:, 3 * hd:4 * hd]
    gate = dh_src + eh_dst + ce_ref[...]
    sigma = 0.5 * jnp.tanh(0.5 * gate) + 0.5       # sigmoid via one EUP tanh
    msg = sigma * bh_src
    # Scatter-add to dst as a (N,E)@(E,H) matmul (one-hot built pre-transposed,
    # so no axis-0 contraction / XLU transpose is needed).
    num = jnp.dot(s_dst_t, msg, preferred_element_type=jnp.float32)
    den = jnp.dot(s_dst_t, sigma, preferred_element_type=jnp.float32)
    hagg = ah + num / (den + 1e-6)                 # exact divide
    # BatchNorm (batch statistics) + ReLU + residual.
    mu = jnp.mean(hagg, axis=0, keepdims=True)
    var = jnp.mean((hagg - mu) ** 2, axis=0, keepdims=True)
    hn = (hagg - mu) * lax.rsqrt(var + 1e-5) * g_ref[...] + bb_ref[...]
    o_ref[...] = h + jnp.maximum(hn, 0.0)


def gated_gcn_layer(lp, h, src_col, dst_col, dst_row):
    n, hd = h.shape
    # e is always the all-ones tensor -> C(e) = ones @ C_w + C_b (constant row).
    ce = (jnp.sum(lp['C_w'], axis=0) + lp['C_b']).reshape(1, hd)
    # TODO(synk): single whole-graph block (the one-hot gather/scatter needs all
    # N and E resident); at realistic sizes tile nodes/edges and make the BN
    # stats a two-pass reduction like the edge-output path below.
    return pl.pallas_call(
        _gcn_layer_kernel,
        out_shape=jax.ShapeDtypeStruct((n, hd), jnp.float32),
    )(h, lp['ABDE_w'].astype(jnp.bfloat16), lp['ABDE_b'].reshape(1, 4 * hd),
      ce, src_col, dst_col, dst_row,
      lp['bn_h_g'].reshape(1, hd), lp['bn_h_b'].reshape(1, hd))


# -----------------------------------------------------------------------------
# Kernel 2: fused per-graph edge_proj3 + VCR encoder + VVR encoder + edge_proj4
# weight.  One program per graph.  No N^2 tensors are ever materialized.
# -----------------------------------------------------------------------------
def _cross_fused_kernel(n_kv, feat_ref, g_ref, qm_ref, w3_ref, w4_ref,
                        wmlp_ref, w2_ref, wp4_ref, vec_ref, o_ref):
    d = w4_ref.shape[0]

    def mm(a, w):                        # bf16 operands, f32 accumulate
        return jnp.dot(a.astype(jnp.bfloat16), w,
                       preferred_element_type=jnp.float32)

    def elu1(v):
        return jnp.where(v > 0, v, jnp.exp(v) - 1.0) + 1.0

    def layer_norm(v, g, b):
        mu = jnp.mean(v, axis=-1, keepdims=True)
        var = jnp.mean((v - mu) ** 2, axis=-1, keepdims=True)
        return (v - mu) * lax.rsqrt(var + 1e-5) * g + b

    # Packed weight slabs sliced with static in-kernel views.
    wq = w4_ref[:, 0:d]
    wk = w4_ref[:, d:2 * d]
    wv = w4_ref[:, 2 * d:3 * d]
    wm = w4_ref[:, 3 * d:4 * d]
    w1a = wmlp_ref[:, 0:2 * d]
    w1b = wmlp_ref[:, 2 * d:4 * d]
    ln1_g = vec_ref[0:1, :]
    ln1_b = vec_ref[1:2, :]
    ln2_g = vec_ref[2:3, :]
    ln2_b = vec_ref[3:4, :]
    b3 = vec_ref[4:5, :]

    def merge_mlp_res(xin, msg):
        msg = mm(msg, wm)
        msg = layer_norm(msg, ln1_g, ln1_b)
        hdn = jnp.maximum(mm(xin, w1a) + mm(msg, w1b), 0.0)
        out = mm(hdn, w2_ref[...])
        out = layer_norm(out, ln2_g, ln2_b)
        return xin + out

    # edge_proj3 on the padded per-graph node features.
    x = mm(feat_ref[0], w3_ref[...]) + b3                       # (N, D)
    gr = g_ref[0]                                               # (1, D)
    qmask = qm_ref[0]                                           # (N, 1)

    # ---- VCR layer: source == global row repeated N times (multiplicity N).
    qf = elu1(mm(x, wq)) * qmask
    kf1 = elu1(mm(gr, wk))                                      # (1, D)
    v1 = mm(gr, wv)                                             # (1, D)
    s1 = jnp.sum(qf * kf1, axis=-1, keepdims=True) * n_kv       # (N, 1)
    z1 = pl.reciprocal(s1 + 1e-6, approx=True)                  # EUP
    q_vcr = merge_mlp_res(x, (s1 * z1) * v1)

    # ---- VVR layer: source == VCR output, every row with multiplicity N.
    qf2 = elu1(mm(q_vcr, wq))
    kf2 = elu1(mm(q_vcr, wk))
    v2 = mm(q_vcr, wv)
    kv = pl.dot(kf2, v2, trans_a=True) * n_kv                   # (D, D) on MXU
    ksum = jnp.sum(kf2, axis=0, keepdims=True) * n_kv           # (1, D)
    z2 = pl.reciprocal(jnp.sum(qf2 * ksum, axis=-1, keepdims=True) + 1e-6,
                       approx=True)
    msg2 = jnp.dot(qf2, kv, preferred_element_type=jnp.float32) * z2
    vvr = merge_mlp_res(q_vcr, msg2)

    # Fold edge_proj4's weight here so the edge kernel only gathers rows.
    o_ref[0] = mm(vvr, wp4_ref[...])


def cross_transformer_vg(feat_pad, global_g, qmask, cp, max_node_num):
    B, N, Din = feat_pad.shape
    D = cp['wp4'].shape[0]

    def per_b(shape):
        return pl.BlockSpec(shape, lambda b: (b, 0, 0))

    def bcast(shape):
        return pl.BlockSpec(shape, lambda b: (0, 0))

    kernel = functools.partial(_cross_fused_kernel, float(max_node_num))
    return pl.pallas_call(
        kernel,
        out_shape=jax.ShapeDtypeStruct((B, N, D), jnp.float32),
        grid=(B,),
        in_specs=[per_b((1, N, Din)), per_b((1, 1, D)), per_b((1, N, 1)),
                  bcast((Din, D)), bcast((D, 4 * D)), bcast((D, 4 * D)),
                  bcast((2 * D, D)), bcast((D, D)), bcast((5, D))],
        out_specs=per_b((1, N, D)),
        compiler_params=pltpu.CompilerParams(dimension_semantics=("parallel",)),
    )(feat_pad, global_g.reshape(B, 1, D), qmask,
      cp['w3'], cp['w4slab'], cp['wmlp'], cp['w2'], cp['wp4'], cp['vec'])


# -----------------------------------------------------------------------------
# Kernels 3a/3b: edge output path, row-tiled over E with two-pass BatchNorm.
# -----------------------------------------------------------------------------
def _edge_pre_kernel(n_valid, sd_ref, idx_ref, wsd_ref, vg_ref, bias_ref,
                     x_ref, stats_ref):
    i = pl.program_id(0)

    @pl.when(i == 0)
    def _():
        stats_ref[...] = jnp.zeros_like(stats_ref)

    te = sd_ref.shape[0]
    bn = vg_ref.shape[0]
    # In-kernel one-hot gather of the per-(graph,dst) global edge term.
    onehot = (lax.broadcasted_iota(jnp.int32, (te, bn), 1)
              == idx_ref[...]).astype(jnp.float32)
    x = (jnp.dot(sd_ref[...].astype(jnp.bfloat16), wsd_ref[...],
                 preferred_element_type=jnp.float32)
         + jnp.dot(onehot, vg_ref[...], preferred_element_type=jnp.float32)
         + bias_ref[...])
    x_ref[...] = x
    # Mask padded rows out of the BN statistics; accumulate in the resident
    # stats output block across the "arbitrary" reduction axis.
    row = i * te + lax.broadcasted_iota(jnp.int32, (te, 1), 0)
    valid = (row < n_valid).astype(jnp.float32)
    xv = x * valid
    stats_ref[...] += jnp.concatenate(
        [jnp.sum(xv, axis=0, keepdims=True),
         jnp.sum(xv * x, axis=0, keepdims=True)], axis=0)


def _edge_bn_kernel(n_valid, x_ref, stats_ref, g_ref, b_ref, o_ref):
    inv_n = 1.0 / float(n_valid)
    mu = stats_ref[0:1, :] * inv_n
    var = stats_ref[1:2, :] * inv_n - mu * mu
    xn = (x_ref[...] - mu) * lax.rsqrt(var + 1e-5) * g_ref[...] + b_ref[...]
    o_ref[...] = jnp.maximum(xn, 0.0)


def edge_output(sd_feat, flat_idx, wsd_bf16, vg_flat, bias_all, bn_g, bn_b):
    E, K = sd_feat.shape
    H = vg_flat.shape[1]
    te = 128 if E > 128 else _round_up(E, 8)
    e_pad = _round_up(E, te)
    if e_pad != E:
        sd_feat = jnp.pad(sd_feat, ((0, e_pad - E), (0, 0)))
        flat_idx = jnp.pad(flat_idx, ((0, e_pad - E), (0, 0)))
    n_tiles = e_pad // te

    def tile_spec(w):
        return pl.BlockSpec((te, w), lambda i: (i, 0))

    def full_spec(shape):
        return pl.BlockSpec(shape, lambda i: (0, 0))

    x_pre, stats = pl.pallas_call(
        functools.partial(_edge_pre_kernel, E),
        out_shape=(jax.ShapeDtypeStruct((e_pad, H), jnp.float32),
                   jax.ShapeDtypeStruct((2, H), jnp.float32)),
        grid=(n_tiles,),
        in_specs=[tile_spec(K), tile_spec(1), full_spec((K, H)),
                  full_spec(vg_flat.shape), full_spec((1, H))],
        out_specs=(tile_spec(H), full_spec((2, H))),
        compiler_params=pltpu.CompilerParams(
            dimension_semantics=("arbitrary",)),
    )(sd_feat, flat_idx, wsd_bf16, vg_flat, bias_all)

    e_out = pl.pallas_call(
        functools.partial(_edge_bn_kernel, E),
        out_shape=jax.ShapeDtypeStruct((e_pad, H), jnp.float32),
        grid=(n_tiles,),
        in_specs=[tile_spec(H), full_spec((2, H)), full_spec((1, H)),
                  full_spec((1, H))],
        out_specs=tile_spec(H),
        compiler_params=pltpu.CompilerParams(
            dimension_semantics=("parallel",)),
    )(x_pre, stats, bn_g, bn_b)
    return e_out[:E]


# -----------------------------------------------------------------------------
# Module composition (thin JAX glue around the Pallas kernels)
# -----------------------------------------------------------------------------
def mefg_forward(params, feat, h, src_idx, dst_idx,
                 node_graph_id, node_local_idx,
                 edge_graph_id, src_local, dst_local,
                 node_counts, max_node_num):
    del src_local  # edge global field depends only on the destination index
    E = src_idx.shape[0]
    H = params['edge_proj2_w'].shape[1]
    B = node_counts.shape[0]
    Din = feat.shape[1]

    # ---- fold Conv1d(2->1,k=3,pad=1) + edge_proj2 into one stacked weight.
    cw, cb = params['edge_proj_w'], params['edge_proj_b']
    eye0 = jnp.eye(Din, dtype=jnp.float32)
    eyep = jnp.eye(Din, k=1, dtype=jnp.float32)     # x[l-1] tap
    eyem = jnp.eye(Din, k=-1, dtype=jnp.float32)    # x[l+1] tap
    ws = cw[0, 0] * eyep + cw[0, 1] * eye0 + cw[0, 2] * eyem
    wd = cw[1, 0] * eyep + cw[1, 1] * eye0 + cw[1, 2] * eyem
    w2 = params['edge_proj2_w']
    wsd = jnp.concatenate([ws @ w2, wd @ w2], axis=0).astype(jnp.bfloat16)
    # Folded bias absorbs the conv bias, edge_proj2/edge_proj4 biases and e0=1.
    bias_all = (1.0 + cb * jnp.sum(w2, axis=0) + params['edge_proj2_b']
                + params['edge_proj4_b']).reshape(1, H)

    # [src_feat | dst_feat] merged LHS -> single K=2*Din matmul in the kernel.
    sd_feat = jnp.concatenate([feat[src_idx], feat[dst_idx]], axis=1)

    # ---- per-graph padded node features + query mask (dgl.unbatch + pad).
    feat_pad = jnp.zeros((B, max_node_num, Din), jnp.float32)
    feat_pad = feat_pad.at[node_graph_id, node_local_idx].set(feat)
    qmask = (jnp.arange(max_node_num)[None, :]
             < node_counts[:, None]).astype(jnp.float32)
    qmask = qmask.reshape(B, max_node_num, 1)

    # ---- GatedGCN global layers (e == ones folded into the constant C row).
    src_col = src_idx.reshape(E, 1).astype(jnp.int32)
    dst_col = dst_idx.reshape(E, 1).astype(jnp.int32)
    dst_row = dst_idx.reshape(1, E).astype(jnp.int32)
    hs2g = h
    for lp in params['gcn_layers']:
        hs2g = gated_gcn_layer(lp, hs2g, src_col, dst_col, dst_row)

    # dgl.mean_nodes (tiny per-graph pooling, left to XLA).
    sums = jax.ops.segment_sum(hs2g, node_graph_id, num_segments=B)
    global_g = sums / node_counts[:, None].astype(jnp.float32)

    # ---- fused edge_proj3 + VCR + VVR cross transformer (+ edge_proj4 weight).
    cp = params['cross']
    cross_packed = dict(
        w3=params['edge_proj3_w'].astype(jnp.bfloat16),
        w4slab=jnp.concatenate([cp['wq'], cp['wk'], cp['wv'], cp['wm']],
                               axis=1).astype(jnp.bfloat16),
        wmlp=jnp.concatenate([cp['mlp_w1a'], cp['mlp_w1b']],
                             axis=1).astype(jnp.bfloat16),
        w2=cp['mlp_w2'].astype(jnp.bfloat16),
        wp4=params['edge_proj4_w'].astype(jnp.bfloat16),
        vec=jnp.stack([cp['ln1_g'], cp['ln1_b'], cp['ln2_g'], cp['ln2_b'],
                       params['edge_proj3_b']], axis=0),
    )
    vg = cross_transformer_vg(feat_pad, global_g, qmask, cross_packed,
                              max_node_num)                     # (B, N, H)
    vg_flat = vg.reshape(B * max_node_num, H)

    # ---- edge output: merged matmul + in-kernel gather + two-pass BatchNorm.
    flat_idx = (edge_graph_id * max_node_num
                + dst_local).reshape(E, 1).astype(jnp.int32)
    e_out = edge_output(sd_feat, flat_idx, wsd, vg_flat, bias_all,
                        params['bn_lr_e_g'].reshape(1, H),
                        params['bn_lr_e_b'].reshape(1, H))
    # TODO(synk): F.dropout(0.1, training=True) omitted (identity at inference).
    return e_out


# -----------------------------------------------------------------------------
# Deterministic parameter init
# -----------------------------------------------------------------------------
def init_params(key, in_dim, hidden_dim, global_layer_num=2):
    keys = list(jax.random.split(key, 64))
    it = iter(keys)

    def w(shape, scale=0.1):
        return (scale * jax.random.normal(next(it), shape)).astype(jnp.float32)

    def zeros(shape):
        return jnp.zeros(shape, jnp.float32)

    def ones(shape):
        return jnp.ones(shape, jnp.float32)

    H = hidden_dim
    gcn_layers = []
    for _ in range(global_layer_num):
        gcn_layers.append(dict(
            ABDE_w=w((H, 4 * H)), ABDE_b=zeros((4 * H,)),   # A|B|D|E pre-fused
            C_w=w((H, H)), C_b=zeros((H,)),
            bn_h_g=ones((H,)), bn_h_b=zeros((H,)),
            # (the layer's e-output BN/ReLU/residual path is unused by MEFG)
        ))
    # TODO(synk): CrossTransformerEncoder source not provided; implemented as
    # the LoFTR-style linear-attention encoder (q/k/v/merge Linear no-bias,
    # LayerNorm, 2-layer MLP no-bias, residual) shared by VCR and VVR.
    cross = dict(
        wq=w((H, H)), wk=w((H, H)), wv=w((H, H)), wm=w((H, H)),
        ln1_g=ones((H,)), ln1_b=zeros((H,)),
        mlp_w1a=w((H, 2 * H)), mlp_w1b=w((H, 2 * H)),       # W1 pre-split
        mlp_w2=w((2 * H, H)),
        ln2_g=ones((H,)), ln2_b=zeros((H,)),
    )
    return dict(
        edge_proj_w=w((2, 3)), edge_proj_b=w(()),
        edge_proj2_w=w((in_dim, H)), edge_proj2_b=zeros((H,)),
        edge_proj3_w=w((in_dim, H)), edge_proj3_b=zeros((H,)),
        edge_proj4_w=w((H, H)), edge_proj4_b=zeros((H,)),
        bn_lr_e_g=ones((H,)), bn_lr_e_b=zeros((H,)),
        gcn_layers=gcn_layers, cross=cross,
    )


# -----------------------------------------------------------------------------
# Example run
# -----------------------------------------------------------------------------
if __name__ == "__main__":
    in_dim = 16
    hidden_dim = 32
    max_node_num = 8
    node_counts_list = [5, 7]            # batch of 2 graphs

    # Small batched graph (bidirected cycles), edges ordered by graph.
    src_l, dst_l, src_loc_l, dst_loc_l, edge_gid_l = [], [], [], [], []
    node_gid_l, node_lid_l = [], []
    offset = 0
    for gi, ng in enumerate(node_counts_list):
        for v in range(ng):
            node_gid_l.append(gi)
            node_lid_l.append(v)
        for v in range(ng):
            u = (v + 1) % ng
            src_loc_l += [v, u]
            dst_loc_l += [u, v]
            src_l += [offset + v, offset + u]
            dst_l += [offset + u, offset + v]
            edge_gid_l += [gi, gi]
        offset += ng

    n_total = offset
    src_idx = jnp.array(src_l, jnp.int32)
    dst_idx = jnp.array(dst_l, jnp.int32)
    src_local = jnp.array(src_loc_l, jnp.int32)
    dst_local = jnp.array(dst_loc_l, jnp.int32)
    edge_graph_id = jnp.array(edge_gid_l, jnp.int32)
    node_graph_id = jnp.array(node_gid_l, jnp.int32)
    node_local_idx = jnp.array(node_lid_l, jnp.int32)
    node_counts = jnp.array(node_counts_list, jnp.int32)
    n_edges = src_idx.shape[0]

    key = jax.random.PRNGKey(0)
    k_feat, k_h, k_params = jax.random.split(key, 3)
    feat = jax.random.normal(k_feat, (n_total, in_dim), jnp.float32)   # g.ndata['feat']
    h = jax.random.normal(k_h, (n_total, hidden_dim), jnp.float32)     # node h input
    params = init_params(k_params, in_dim, hidden_dim, global_layer_num=2)

    e_out = mefg_forward(params, feat, h, src_idx, dst_idx,
                         node_graph_id, node_local_idx,
                         edge_graph_id, src_local, dst_local,
                         node_counts, max_node_num)
    e_out = jax.block_until_ready(e_out)
    assert e_out.shape == (n_edges, hidden_dim)
    assert bool(jnp.all(jnp.isfinite(e_out)))
    print("KERNEL_OK")
</pallas_src>

<mosaic_0001>
module attributes {stable_mosaic.version = 11 : i64} {
  func.func @_gcn_layer_kernel(%arg0: memref<12x32xf32, #tpu.memory_space<vmem>>, %arg1: memref<32x128xbf16, #tpu.memory_space<vmem>>, %arg2: memref<1x128xf32, #tpu.memory_space<vmem>>, %arg3: memref<1x32xf32, #tpu.memory_space<vmem>>, %arg4: memref<24x1xi32, #tpu.memory_space<vmem>>, %arg5: memref<24x1xi32, #tpu.memory_space<vmem>>, %arg6: memref<1x24xi32, #tpu.memory_space<vmem>>, %arg7: memref<1x32xf32, #tpu.memory_space<vmem>>, %arg8: memref<1x32xf32, #tpu.memory_space<vmem>>, %arg9: memref<12x32xf32, #tpu.memory_space<vmem>>) attributes {dimension_semantics = [], scalar_prefetch = 0 : i64, scratch_operands = 0 : i64, tpu.core_type = #tpu.core_type<tc>} {
    %c0 = arith.constant 0 : index
    %c0_0 = arith.constant 0 : index
    %0 = vector.load %arg0[%c0, %c0_0] : memref<12x32xf32, #tpu.memory_space<vmem>>, vector<12x32xf32>
    %1 = arith.truncf %0 : vector<12x32xf32> to vector<12x32xbf16>
    %c0_1 = arith.constant 0 : index
    %c0_2 = arith.constant 0 : index
    %2 = vector.load %arg1[%c0_1, %c0_2] : memref<32x128xbf16, #tpu.memory_space<vmem>>, vector<32x128xbf16>
    %cst = arith.constant dense<0.000000e+00> : vector<12x128xf32>
    %3 = tpu.matmul %1, %2, %cst {dimension_numbers = #tpu.dot_dimension_numbers<[1], [0], [0], [1], [0, 0, 1, 1], [], []>} : vector<12x32xbf16>, vector<32x128xbf16>, vector<12x128xf32> -> vector<12x128xf32>
    %c0_3 = arith.constant 0 : index
    %c0_4 = arith.constant 0 : index
    %4 = vector.load %arg2[%c0_3, %c0_4] : memref<1x128xf32, #tpu.memory_space<vmem>>, vector<1x128xf32>
    %5 = vector.broadcast %4 : vector<1x128xf32> to vector<12x128xf32>
    %6 = arith.addf %3, %5 : vector<12x128xf32>
    %7 = tpu.iota {dimensions = array<i32: 1>} : vector<24x12xi32>
    %c0_5 = arith.constant 0 : index
    %c0_6 = arith.constant 0 : index
    %8 = vector.load %arg4[%c0_5, %c0_6] : memref<24x1xi32, #tpu.memory_space<vmem>>, vector<24x1xi32>
    %9 = vector.broadcast %8 : vector<24x1xi32> to vector<24x12xi32>
    %10 = arith.cmpi eq, %7, %9 : vector<24x12xi32>
    %11 = arith.extui %10 : vector<24x12xi1> to vector<24x12xi32>
    %12 = arith.sitofp %11 : vector<24x12xi32> to vector<24x12xf32>
    %c0_7 = arith.constant 0 : index
    %c0_8 = arith.constant 0 : index
    %13 = vector.load %arg5[%c0_7, %c0_8] : memref<24x1xi32, #tpu.memory_space<vmem>>, vector<24x1xi32>
    %14 = vector.broadcast %13 : vector<24x1xi32> to vector<24x12xi32>
    %15 = arith.cmpi eq, %7, %14 : vector<24x12xi32>
    %16 = arith.extui %15 : vector<24x12xi1> to vector<24x12xi32>
    %17 = arith.sitofp %16 : vector<24x12xi32> to vector<24x12xf32>
    %18 = tpu.iota {dimensions = array<i32: 0>} : vector<12x24xi32>
    %c0_9 = arith.constant 0 : index
    %c0_10 = arith.constant 0 : index
    %19 = vector.load %arg6[%c0_9, %c0_10] : memref<1x24xi32, #tpu.memory_space<vmem>>, vector<1x24xi32>
    %20 = vector.broadcast %19 : vector<1x24xi32> to vector<12x24xi32>
    %21 = arith.cmpi eq, %18, %20 : vector<12x24xi32>
    %22 = arith.extui %21 : vector<12x24xi1> to vector<12x24xi32>
    %23 = arith.sitofp %22 : vector<12x24xi32> to vector<12x24xf32>
    %cst_11 = arith.constant dense<0.000000e+00> : vector<24x128xf32>
    %24 = tpu.matmul %12, %6, %cst_11 {dimension_numbers = #tpu.dot_dimension_numbers<[1], [0], [0], [1], [0, 0, 1, 1], [], []>} : vector<24x12xf32>, vector<12x128xf32>, vector<24x128xf32> -> vector<24x128xf32>
    %cst_12 = arith.constant dense<0.000000e+00> : vector<24x128xf32>
    %25 = tpu.matmul %17, %6, %cst_12 {dimension_numbers = #tpu.dot_dimension_numbers<[1], [0], [0], [1], [0, 0, 1, 1], [], []>} : vector<24x12xf32>, vector<12x128xf32>, vector<24x128xf32> -> vector<24x128xf32>
    %26 = vector.extract_strided_slice %6 {offsets = [0, 0], sizes = [12, 32], strides = [1, 1]} : vector<12x128xf32> to vector<12x32xf32>
    %27 = vector.extract_strided_slice %24 {offsets = [0, 32], sizes = [24, 32], strides = [1, 1]} : vector<24x128xf32> to vector<24x32xf32>
    %28 = vector.extract_strided_slice %24 {offsets = [0, 64], sizes = [24, 32], strides = [1, 1]} : vector<24x128xf32> to vector<24x32xf32>
    %29 = vector.extract_strided_slice %25 {offsets = [0, 96], sizes = [24, 32], strides = [1, 1]} : vector<24x128xf32> to vector<24x32xf32>
    %30 = arith.addf %28, %29 : vector<24x32xf32>
    %c0_13 = arith.constant 0 : index
    %c0_14 = arith.constant 0 : index
    %31 = vector.load %arg3[%c0_13, %c0_14] : memref<1x32xf32, #tpu.memory_space<vmem>>, vector<1x32xf32>
    %32 = vector.broadcast %31 : vector<1x32xf32> to vector<24x32xf32>
    %33 = arith.addf %30, %32 : vector<24x32xf32>
    %cst_15 = arith.constant 5.000000e-01 : f32
    %34 = vector.broadcast %cst_15 : f32 to vector<24x32xf32>
    %35 = arith.mulf %34, %33 : vector<24x32xf32>
    %36 = math.tanh %35 : vector<24x32xf32>
    %cst_16 = arith.constant 5.000000e-01 : f32
    %37 = vector.broadcast %cst_16 : f32 to vector<24x32xf32>
    %38 = arith.mulf %37, %36 : vector<24x32xf32>
    %cst_17 = arith.constant 5.000000e-01 : f32
    %39 = vector.broadcast %cst_17 : f32 to vector<24x32xf32>
    %40 = arith.addf %38, %39 : vector<24x32xf32>
    %41 = arith.mulf %40, %27 : vector<24x32xf32>
    %cst_18 = arith.constant dense<0.000000e+00> : vector<12x32xf32>
    %42 = tpu.matmul %23, %41, %cst_18 {dimension_numbers = #tpu.dot_dimension_numbers<[1], [0], [0], [1], [0, 0, 1, 1], [], []>} : vector<12x24xf32>, vector<24x32xf32>, vector<12x32xf32> -> vector<12x32xf32>
    %cst_19 = arith.constant dense<0.000000e+00> : vector<12x32xf32>
    %43 = tpu.matmul %23, %40, %cst_19 {dimension_numbers = #tpu.dot_dimension_numbers<[1], [0], [0], [1], [0, 0, 1, 1], [], []>} : vector<12x24xf32>, vector<24x32xf32>, vector<12x32xf32> -> vector<12x32xf32>
    %cst_20 = arith.constant 9.99999997E-7 : f32
    %44 = vector.broadcast %cst_20 : f32 to vector<12x32xf32>
    %45 = arith.addf %43, %44 : vector<12x32xf32>
    %46 = arith.divf %42, %45 : vector<12x32xf32>
    %47 = arith.addf %26, %46 : vector<12x32xf32>
    %cst_21 = arith.constant dense<0.000000e+00> : vector<32xf32>
    %48 = vector.multi_reduction <add>, %47, %cst_21 [0] : vector<12x32xf32> to vector<32xf32>
    %49 = vector.shape_cast %48 : vector<32xf32> to vector<1x32xf32>
    %cst_22 = arith.constant 1.200000e+01 : f32
    %50 = vector.broadcast %cst_22 : f32 to vector<1x32xf32>
    %51 = arith.divf %49, %50 : vector<1x32xf32>
    %52 = vector.broadcast %51 : vector<1x32xf32> to vector<12x32xf32>
    %53 = arith.subf %47, %52 : vector<12x32xf32>
    %54 = arith.mulf %53, %53 : vector<12x32xf32>
    %cst_23 = arith.constant dense<0.000000e+00> : vector<32xf32>
    %55 = vector.multi_reduction <add>, %54, %cst_23 [0] : vector<12x32xf32> to vector<32xf32>
    %56 = vector.shape_cast %55 : vector<32xf32> to vector<1x32xf32>
    %cst_24 = arith.constant 1.200000e+01 : f32
    %57 = vector.broadcast %cst_24 : f32 to vector<1x32xf32>
    %58 = arith.divf %56, %57 : vector<1x32xf32>
    %59 = vector.broadcast %51 : vector<1x32xf32> to vector<12x32xf32>
    %60 = arith.subf %47, %59 : vector<12x32xf32>
    %cst_25 = arith.constant 9.99999974E-6 : f32
    %61 = vector.broadcast %cst_25 : f32 to vector<1x32xf32>
    %62 = arith.addf %58, %61 : vector<1x32xf32>
    %63 = math.rsqrt %62 : vector<1x32xf32>
    %64 = vector.broadcast %63 : vector<1x32xf32> to vector<12x32xf32>
    %65 = arith.mulf %60, %64 : vector<12x32xf32>
    %c0_26 = arith.constant 0 : index
    %c0_27 = arith.constant 0 : index
    %66 = vector.load %arg7[%c0_26, %c0_27] : memref<1x32xf32, #tpu.memory_space<vmem>>, vector<1x32xf32>
    %67 = vector.broadcast %66 : vector<1x32xf32> to vector<12x32xf32>
    %68 = arith.mulf %65, %67 : vector<12x32xf32>
    %c0_28 = arith.constant 0 : index
    %c0_29 = arith.constant 0 : index
    %69 = vector.load %arg8[%c0_28, %c0_29] : memref<1x32xf32, #tpu.memory_space<vmem>>, vector<1x32xf32>
    %70 = vector.broadcast %69 : vector<1x32xf32> to vector<12x32xf32>
    %71 = arith.addf %68, %70 : vector<12x32xf32>
    %cst_30 = arith.constant 0.000000e+00 : f32
    %72 = vector.broadcast %cst_30 : f32 to vector<12x32xf32>
    %73 = arith.maximumf %71, %72 : vector<12x32xf32>
    %74 = arith.addf %0, %73 : vector<12x32xf32>
    %c0_31 = arith.constant 0 : index
    %c0_32 = arith.constant 0 : index
    %75 = vector.load %arg9[%c0_31, %c0_32] : memref<12x32xf32, #tpu.memory_space<vmem>>, vector<12x32xf32>
    tpu.vector_store %arg9[%c0_31, %c0_32], %74 {strides = array<i32>} : memref<12x32xf32, #tpu.memory_space<vmem>>, vector<12x32xf32>,
    return
  }
}

</mosaic_0001>

<llo_original>
// kernel: tpu_custom_call.1
$region0: #{tpu_custom_call.1}
  #allocation0 [shape = 'u32[]', space=smem, size = 0x4, offset = 0x4, fixed_abs, tag = 'smem constant byte address 0x4 - core index']
  #allocation1 [shape = 'u32[144,128]{1,0:T(1,128)}', space=vmem, size = 0x12000, scoped, tag = 'internal scratch']
  %s0 = inlined_call_operand.vmem [shape: f32[12,32], index: 0, kind: input, shape index: {}]
  %s1 = inlined_call_operand.vmem [shape: bf16[32,128], index: 1, kind: input, shape index: {}]
  %s2 = inlined_call_operand.vmem [shape: f32[1,128], index: 2, kind: input, shape index: {}]
  %s3 = inlined_call_operand.vmem [shape: f32[1,32], index: 3, kind: input, shape index: {}]
  %s4 = inlined_call_operand.vmem [shape: s32[24,1], index: 4, kind: input, shape index: {}]
  %s5 = inlined_call_operand.vmem [shape: s32[24,1], index: 5, kind: input, shape index: {}]
  %s6 = inlined_call_operand.vmem [shape: s32[1,24], index: 6, kind: input, shape index: {}]
  %s7 = inlined_call_operand.vmem [shape: f32[1,32], index: 7, kind: input, shape index: {}]
  %s8 = inlined_call_operand.vmem [shape: f32[1,32], index: 8, kind: input, shape index: {}]
  %s9 = inlined_call_operand.hbm [shape: f32[12,32], index: 9, kind: output, shape index: {}]
  %s10 = sld [smem:[#allocation0]]
  $region46: #{tpu_custom_call.1} parent=0
    _
  %s12 = ssub.s32 1, %s10
  %s13 = scalar_select 0, %s12, %s10
  $region1: #{tpu_custom_call.1} parent=0
    #allocation2 [shape = 'u8[8192]{0}', space=vmem, size = 0x2000, scoped, tag = 'output window, operand 0, single buffered']
    #allocation3 [shape = 's32[1]{0}', space=sflag, size = 0x4, scoped, tag = 'scoped memory for tpu_custom_call.1']
    %14 = vsyncpa [#allocation3], 0
    // Predicated region
    $region2: #{tpu_custom_call.1} parent=1 // pred_check
      _
    $region3: #{tpu_custom_call.1} parent=1 // pred_check_branch
      %16 = sbr.rel (0) target = $region5
    $region4: #{tpu_custom_call.1} parent=1 // pred_region
      _
    $region5: #{tpu_custom_call.1} parent=1 // pred_fallthru
      _
    // Predicated region
    $region6: #{tpu_custom_call.1} parent=1 // pred_check
      _
    $region7: #{tpu_custom_call.1} parent=1 // pred_check_branch
      %18 = sbr.rel (0) target = $region9
    $region8: #{tpu_custom_call.1} parent=1 // pred_region
      _
    $region9: #{tpu_custom_call.1} parent=1 // pred_fallthru
      _
    // Predicated region
    $region10: #{tpu_custom_call.1} parent=1 // pred_check
      _
    $region11: #{tpu_custom_call.1} parent=1 // pred_check_branch
      %20 = sbr.rel (0) target = $region13
    $region12: #{tpu_custom_call.1} parent=1 // pred_region
      _
    $region13: #{tpu_custom_call.1} parent=1 // pred_fallthru
      _
    // Predicated region
    $region14: #{tpu_custom_call.1} parent=1 // pred_check
      _
    $region15: #{tpu_custom_call.1} parent=1 // pred_check_branch
      %22 = sbr.rel (0) target = $region17
    $region16: #{tpu_custom_call.1} parent=1 // pred_region
      _
    $region17: #{tpu_custom_call.1} parent=1 // pred_fallthru
      _
    // Predicated region
    $region18: #{tpu_custom_call.1} parent=1 // pred_check
      _
    $region19: #{tpu_custom_call.1} parent=1 // pred_check_branch
      %24 = sbr.rel (0) target = $region21
    $region20: #{tpu_custom_call.1} parent=1 // pred_region
      _
    $region21: #{tpu_custom_call.1} parent=1 // pred_fallthru
      _
    // Predicated region
    $region22: #{tpu_custom_call.1} parent=1 // pred_check
      _
    $region23: #{tpu_custom_call.1} parent=1 // pred_check_branch
      %26 = sbr.rel (0) target = $region25
    $region24: #{tpu_custom_call.1} parent=1 // pred_region
      _
    $region25: #{tpu_custom_call.1} parent=1 // pred_fallthru
      _
    // Predicated region
    $region26: #{tpu_custom_call.1} parent=1 // pred_check
      _
    $region27: #{tpu_custom_call.1} parent=1 // pred_check_branch
      %28 = sbr.rel (0) target = $region29
    $region28: #{tpu_custom_call.1} parent=1 // pred_region
      _
    $region29: #{tpu_custom_call.1} parent=1 // pred_fallthru
      _
    // Predicated region
    $region30: #{tpu_custom_call.1} parent=1 // pred_check
      _
    $region31: #{tpu_custom_call.1} parent=1 // pred_check_branch
      %30 = sbr.rel (0) target = $region33
    $region32: #{tpu_custom_call.1} parent=1 // pred_region
      _
    $region33: #{tpu_custom_call.1} parent=1 // pred_fallthru
      _
    // Predicated region
    $region34: #{tpu_custom_call.1} parent=1 // pred_check
      _
    $region35: #{tpu_custom_call.1} parent=1 // pred_check_branch
      %32 = sbr.rel (0) target = $region37
    $region36: #{tpu_custom_call.1} parent=1 // pred_region
      _
    $region37: #{tpu_custom_call.1} parent=1 // pred_fallthru
      _
    %v34 = vld [vmem:[%s0] sm:$0xff]
    %v35 = vld [vmem:[%s0 + $0x8] sm:$0xf]
    %v36 = vpack.c.bf16 %v35, %v34
    %v37 = vld [vmem:[%s1] sm:$0xf]
    %v38 = vld [vmem:[%s1 + $0x4] sm:$0xf]
    %v39 = vld [vmem:[%s1 + $0x8] sm:$0xf]
    %v40 = vld [vmem:[%s1 + $0xc] sm:$0xf]
    %v41 = vld [vmem:[%s2] sm:$0x1]
    %v43 = vlaneseq
    %v44 = vshrl.u32 %v43, 7
    %v45 = vsub.s32 0, %v44
    %v46 = vrot.slane %v41, %v45
    %v52 = vunpack.c.l.b16 %v37
    %v53 = vunpack.c.l.b16 %v38
    %v54 = vunpack.c.l.b16 %v39
    %v55 = vunpack.c.l.b16 %v40
    %v56 = vpack.c.b16 %v53, %v52
    %v57 = vpack.c.b16 %v55, %v54
    %vm60 = vcmask 261120
    %v62 = vsel %vm60, %v36, 0
    %64 = vmatprep.subr.bf16.mxu0 0
    %65 = vmatpush1.bf16.msra.mxu0 %v56
    %66 = vmatprep.subr.bf16.mxu0 0
    %67 = vmatpush1.bf16.msra.mxu0 %v57
    %68 = vmatprep.subr.bf16.mxu0 0
    %69 = vmatpush1.bf16.msra.mxu0 0
    %70 = vmatprep.subr.bf16.mxu0 0
    %71 = vmatpush1.bf16.msra.mxu0 0
    %72 = vmatprep.subr.bf16.mxu0 0
    %73 = vmatpush1.bf16.msra.mxu0 0
    %74 = vmatprep.subr.bf16.mxu0 0
    %75 = vmatpush1.bf16.msra.mxu0 0
    %76 = vmatprep.subr.bf16.mxu0 0
    %77 = vmatpush1.bf16.msra.mxu0 0
    %78 = vmatprep.subr.bf16.mxu0 0
    %79 = vmatpush1.bf16.msra.mxu0 0
    %80 = vmatprep.subr.bf16.mxu0 0
    %81 = vmatpush1.bf16.msra.mxu0 0
    %82 = vmatprep.subr.bf16.mxu0 0
    %83 = vmatpush1.bf16.msra.mxu0 0
    %84 = vmatprep.subr.bf16.mxu0 0
    %85 = vmatpush1.bf16.msra.mxu0 0
    %86 = vmatprep.subr.bf16.mxu0 0
    %87 = vmatpush1.bf16.msra.mxu0 0
    %88 = vmatprep.subr.bf16.mxu0 0
    %89 = vmatpush1.bf16.msra.mxu0 0
    %90 = vmatprep.subr.bf16.mxu0 0
    %91 = vmatpush1.bf16.msra.mxu0 0
    %92 = vmatprep.subr.bf16.mxu0 0
    %93 = vmatpush1.bf16.msra.mxu0 0
    %94 = vmatprep.subr.bf16.mxu0 0
    %95 = vmatpush1.bf16.msra.mxu0 0
    %96 = vmatprep.mubr.bf16.mxu0 0
    %97 = vmatmul.mubr.bf16.gmra.mrb[0].mxu0 %v62
    %v98 = vpop.f32.mrb[0].mxu0
    %v99 = vadd.f32 %v46, %v98
    %v100 = vpop.f32.mrb[0].mxu0
    %v101 = vpop.f32.mrb[0].mxu0
    %v102 = vadd.f32 %v46, %v101
    %v103 = vpop.f32.mrb[0].mxu0
    %104 = vdwg.mxu0
    %v105 = vlaneseq
    %v106 = vand.u32 %v105, 127
    %v107 = vld [vmem:[%s4] sm:$0xff]
    %v108 = vld [vmem:[%s4 + $0x8] sm:$0xff]
    %v109 = vld [vmem:[%s4 + $0x10] sm:$0xff]
    %110 = vset.pattern.permute.xlu0 0
    %111 = vperm.xlu0 %110, %v107
    %v112 = vpop.permute.xlu0 %111
    %113 = vset.pattern.permute.xlu0 0
    %114 = vperm.xlu0 %113, %v108
    %v115 = vpop.permute.xlu0 %114
    %116 = vset.pattern.permute.xlu0 0
    %117 = vperm.xlu0 %116, %v109
    %v118 = vpop.permute.xlu0 %117
    %vm119 = vcmp.eq.s32.totalorder %v106, %v112
    %vm120 = vcmp.eq.s32.totalorder %v106, %v115
    %vm121 = vcmp.eq.s32.totalorder %v106, %v118
    %v122 = vsel %vm119, 1, 0
    %v123 = vsel %vm120, 1, 0
    %v124 = vsel %vm121, 1, 0
    %v125 = vcvt.s32.f32 %v122
    %v126 = vcvt.s32.f32 %v123
    %v127 = vcvt.s32.f32 %v124
    %v128 = vld [vmem:[%s5] sm:$0xff]
    %v129 = vld [vmem:[%s5 + $0x8] sm:$0xff]
    %v130 = vld [vmem:[%s5 + $0x10] sm:$0xff]
    %131 = vset.pattern.permute.xlu0 0
    %132 = vperm.xlu0 %131, %v128
    %v133 = vpop.permute.xlu0 %132
    %134 = vset.pattern.permute.xlu0 0
    %135 = vperm.xlu0 %134, %v129
    %v136 = vpop.permute.xlu0 %135
    %137 = vset.pattern.permute.xlu0 0
    %138 = vperm.xlu0 %137, %v130
    %v139 = vpop.permute.xlu0 %138
    %vm140 = vcmp.eq.s32.totalorder %v106, %v133
    %vm141 = vcmp.eq.s32.totalorder %v106, %v136
    %vm142 = vcmp.eq.s32.totalorder %v106, %v139
    %v143 = vsel %vm140, 1, 0
    %v144 = vsel %vm141, 1, 0
    %v145 = vsel %vm142, 1, 0
    %v146 = vcvt.s32.f32 %v143
    %v147 = vcvt.s32.f32 %v144
    %v148 = vcvt.s32.f32 %v145
    %v149 = vlaneseq
    %v150 = vshrl.u32 %v149, 7
    %v151 = vadd.s32 %v150, 8
    %v152 = vld [vmem:[%s6] sm:$0x1]
    %v153 = vlaneseq
    %v154 = vshrl.u32 %v153, 7
    %v155 = vsub.s32 0, %v154
    %v156 = vrot.slane %v152, %v155
    %vm157 = vcmp.eq.s32.totalorder %v150, %v156
    %vm158 = vcmp.eq.s32.totalorder %v151, %v156
    %v159 = vsel %vm157, 1, 0
    %v160 = vsel %vm158, 1, 0
    %v161 = vcvt.s32.f32 %v159
    %v162 = vcvt.s32.f32 %v160
    %vm163 = vcmask 97280
    %v165 = vsel %vm163, %v125, 0
    %v168 = vsel %vm163, %v126, 0
    %v171 = vsel %vm163, %v127, 0
    %vm173 = vcmask 1043456
    %v175 = vsel %vm173, %v102, 0
    %177 = vmatprep.subr.mxu0 0.0
    %178 = vmatpush1.msra.mxu0 %v99
    %179 = vmatprep.subr.mxu0 0.0
    %180 = vmatpush1.msra.mxu0 %v175
    %181 = vmatprep.subr.mxu0 0.0
    %182 = vmatpush1.msra.mxu0 0.0
    %183 = vmatprep.subr.mxu0 0.0
    %184 = vmatpush1.msra.mxu0 0.0
    %185 = vmatprep.subr.mxu0 0.0
    %186 = vmatpush1.msra.mxu0 0.0
    %187 = vmatprep.subr.mxu0 0.0
    %188 = vmatpush1.msra.mxu0 0.0
    %189 = vmatprep.subr.mxu0 0.0
    %190 = vmatpush1.msra.mxu0 0.0
    %191 = vmatprep.subr.mxu0 0.0
    %192 = vmatpush1.msra.mxu0 0.0
    %193 = vmatprep.subr.mxu0 0.0
    %194 = vmatpush1.msra.mxu0 0.0
    %195 = vmatprep.subr.mxu0 0.0
    %196 = vmatpush1.msra.mxu0 0.0
    %197 = vmatprep.subr.mxu0 0.0
    %198 = vmatpush1.msra.mxu0 0.0
    %199 = vmatprep.subr.mxu0 0.0
    %200 = vmatpush1.msra.mxu0 0.0
    %201 = vmatprep.subr.mxu0 0.0
    %202 = vmatpush1.msra.mxu0 0.0
    %203 = vmatprep.subr.mxu0 0.0
    %204 = vmatpush1.msra.mxu0 0.0
    %205 = vmatprep.subr.mxu0 0.0
    %206 = vmatpush1.msra.mxu0 0.0
    %207 = vmatprep.subr.mxu0 0.0
    %208 = vmatpush1.msra.mxu0 0.0
    %209 = vmatprep.subr.mxu0 0.0
    %210 = vmatpush1.msra.mxu0 0.0
    %211 = vmatprep.subr.mxu0 0.0
    %212 = vmatpush1.msra.mxu0 0.0
    %213 = vmatprep.subr.mxu0 0.0
    %214 = vmatpush1.msra.mxu0 0.0
    %215 = vmatprep.subr.mxu0 0.0
    %216 = vmatpush1.msra.mxu0 0.0
    %217 = vmatprep.subr.mxu0 0.0
    %218 = vmatpush1.msra.mxu0 0.0
    %219 = vmatprep.subr.mxu0 0.0
    %220 = vmatpush1.msra.mxu0 0.0
    %221 = vmatprep.subr.mxu0 0.0
    %222 = vmatpush1.msra.mxu0 0.0
    %223 = vmatprep.subr.mxu0 0.0
    %224 = vmatpush1.msra.mxu0 0.0
    %225 = vmatprep.subr.mxu0 0.0
    %226 = vmatpush1.msra.mxu0 0.0
    %227 = vmatprep.subr.mxu0 0.0
    %228 = vmatpush1.msra.mxu0 0.0
    %229 = vmatprep.subr.mxu0 0.0
    %230 = vmatpush1.msra.mxu0 0.0
    %231 = vmatprep.subr.mxu0 0.0
    %232 = vmatpush1.msra.mxu0 0.0
    %233 = vmatprep.subr.mxu0 0.0
    %234 = vmatpush1.msra.mxu0 0.0
    %235 = vmatprep.subr.mxu0 0.0
    %236 = vmatpush1.msra.mxu0 0.0
    %237 = vmatprep.subr.mxu0 0.0
    %238 = vmatpush1.msra.mxu0 0.0
    %239 = vmatprep.subr.mxu0 0.0
    %240 = vmatpush1.msra.mxu0 0.0
    %241 = vmatprep.mubr.f32.mxu0 0.0
    %242 = vmatmul.mubr.f32.gmra.mrb[0].mxu0 %v165
    %v243 = vpop.f32.mrb[0].mxu0
    %v244 = vadd.f32 0.0, %v243
    %v245 = vpop.f32.mrb[0].mxu0
    %246 = vmatprep.mubr.f32.mxu0 0.0
    %247 = vmatmul.mubr.f32.gmra.mrb[0].mxu0 %v168
    %v248 = vpop.f32.mrb[0].mxu0
    %v249 = vadd.f32 0.0, %v248
    %v250 = vpop.f32.mrb[0].mxu0
    %251 = vmatprep.mubr.f32.mxu0 0.0
    %252 = vmatmul.mubr.f32.gmra.mrb[0].mxu0 %v171
    %v253 = vpop.f32.mrb[0].mxu0
    %v254 = vadd.f32 0.0, %v253
    %v255 = vpop.f32.mrb[0].mxu0
    %256 = vdwg.mxu0
    %v258 = vsel %vm163, %v146, 0
    %v261 = vsel %vm163, %v147, 0
    %v264 = vsel %vm163, %v148, 0
    %266 = vmatprep.subr.mxu0 0.0
    %267 = vmatpush1.msra.mxu0 %v99
    %268 = vmatprep.subr.mxu0 0.0
    %269 = vmatpush1.msra.mxu0 %v175
    %270 = vmatprep.subr.mxu0 0.0
    %271 = vmatpush1.msra.mxu0 0.0
    %272 = vmatprep.subr.mxu0 0.0
    %273 = vmatpush1.msra.mxu0 0.0
    %274 = vmatprep.subr.mxu0 0.0
    %275 = vmatpush1.msra.mxu0 0.0
    %276 = vmatprep.subr.mxu0 0.0
    %277 = vmatpush1.msra.mxu0 0.0
    %278 = vmatprep.subr.mxu0 0.0
    %279 = vmatpush1.msra.mxu0 0.0
    %280 = vmatprep.subr.mxu0 0.0
    %281 = vmatpush1.msra.mxu0 0.0
    %282 = vmatprep.subr.mxu0 0.0
    %283 = vmatpush1.msra.mxu0 0.0
    %284 = vmatprep.subr.mxu0 0.0
    %285 = vmatpush1.msra.mxu0 0.0
    %286 = vmatprep.subr.mxu0 0.0
    %287 = vmatpush1.msra.mxu0 0.0
    %288 = vmatprep.subr.mxu0 0.0
    %289 = vmatpush1.msra.mxu0 0.0
    %290 = vmatprep.subr.mxu0 0.0
    %291 = vmatpush1.msra.mxu0 0.0
    %292 = vmatprep.subr.mxu0 0.0
    %293 = vmatpush1.msra.mxu0 0.0
    %294 = vmatprep.subr.mxu0 0.0
    %295 = vmatpush1.msra.mxu0 0.0
    %296 = vmatprep.subr.mxu0 0.0
    %297 = vmatpush1.msra.mxu0 0.0
    %298 = vmatprep.subr.mxu0 0.0
    %299 = vmatpush1.msra.mxu0 0.0
    %300 = vmatprep.subr.mxu0 0.0
    %301 = vmatpush1.msra.mxu0 0.0
    %302 = vmatprep.subr.mxu0 0.0
    %303 = vmatpush1.msra.mxu0 0.0
    %304 = vmatprep.subr.mxu0 0.0
    %305 = vmatpush1.msra.mxu0 0.0
    %306 = vmatprep.subr.mxu0 0.0
    %307 = vmatpush1.msra.mxu0 0.0
    %308 = vmatprep.subr.mxu0 0.0
    %309 = vmatpush1.msra.mxu0 0.0
    %310 = vmatprep.subr.mxu0 0.0
    %311 = vmatpush1.msra.mxu0 0.0
    %312 = vmatprep.subr.mxu0 0.0
    %313 = vmatpush1.msra.mxu0 0.0
    %314 = vmatprep.subr.mxu0 0.0
    %315 = vmatpush1.msra.mxu0 0.0
    %316 = vmatprep.subr.mxu0 0.0
    %317 = vmatpush1.msra.mxu0 0.0
    %318 = vmatprep.subr.mxu0 0.0
    %319 = vmatpush1.msra.mxu0 0.0
    %320 = vmatprep.subr.mxu0 0.0
    %321 = vmatpush1.msra.mxu0 0.0
    %322 = vmatprep.subr.mxu0 0.0
    %323 = vmatpush1.msra.mxu0 0.0
    %324 = vmatprep.subr.mxu0 0.0
    %325 = vmatpush1.msra.mxu0 0.0
    %326 = vmatprep.subr.mxu0 0.0
    %327 = vmatpush1.msra.mxu0 0.0
    %328 = vmatprep.subr.mxu0 0.0
    %329 = vmatpush1.msra.mxu0 0.0
    %330 = vmatprep.mubr.f32.mxu0 0.0
    %331 = vmatmul.mubr.f32.gmra.mrb[0].mxu0 %v258
    %v332 = vpop.f32.mrb[0].mxu0
    %v333 = vadd.f32 0.0, %v332
    %v334 = vpop.f32.mrb[0].mxu0
    %335 = vmatprep.mubr.f32.mxu0 0.0
    %336 = vmatmul.mubr.f32.gmra.mrb[0].mxu0 %v261
    %v337 = vpop.f32.mrb[0].mxu0
    %v338 = vadd.f32 0.0, %v337
    %v339 = vpop.f32.mrb[0].mxu0
    %340 = vmatprep.mubr.f32.mxu0 0.0
    %341 = vmatmul.mubr.f32.gmra.mrb[0].mxu0 %v264
    %v342 = vpop.f32.mrb[0].mxu0
    %v343 = vadd.f32 0.0, %v342
    %v344 = vpop.f32.mrb[0].mxu0
    %345 = vdwg.mxu0
    %349 = vrot.lane.b32.xlu0 %v333, 96
    %v350 = vpop.permute.xlu0 %349
    %351 = vrot.lane.b32.xlu0 %v338, 96
    %v352 = vpop.permute.xlu0 %351
    %353 = vrot.lane.b32.xlu0 %v343, 96
    %v354 = vpop.permute.xlu0 %353
    %v358 = vadd.f32 %v244, %v350
    %v359 = vadd.f32 %v249, %v352
    %v360 = vadd.f32 %v254, %v354
    %v361 = vld [vmem:[%s3] sm:$0x1]
    %v363 = vlaneseq
    %v364 = vshrl.u32 %v363, 7
    %v365 = vsub.s32 0, %v364
    %v366 = vrot.slane %v361, %v365
    %367 = vrot.lane.b32.xlu0 %v366, 64
    %v368 = vpop.permute.xlu0 %367
    %v370 = vadd.f32 %v358, %v368
    %v371 = vadd.f32 %v359, %v368
    %v372 = vadd.f32 %v360, %v368
    %v373 = vmul.f32 %v370, 0.5
    %v374 = vmul.f32 %v371, 0.5
    %v375 = vmul.f32 %v372, 0.5
    %v376 = vtanh.pop %v373
    %v377 = vtanh.pop %v374
    %v378 = vtanh.pop %v375
    %v379 = vmul.f32 %v376, 0.5
    %v380 = vmul.f32 %v377, 0.5
    %v381 = vmul.f32 %v378, 0.5
    %v382 = vadd.f32 %v379, 0.5
    %v383 = vadd.f32 %v380, 0.5
    %v384 = vadd.f32 %v381, 0.5
    %388 = vrot.lane.b32.xlu0 %v244, 32
    %v389 = vpop.permute.xlu0 %388
    %390 = vrot.lane.b32.xlu0 %v249, 32
    %v391 = vpop.permute.xlu0 %390
    %392 = vrot.lane.b32.xlu0 %v254, 32
    %v393 = vpop.permute.xlu0 %392
    %v397 = vmul.f32 %v382, %v389
    %v398 = vmul.f32 %v383, %v391
    %v399 = vmul.f32 %v384, %v393
    %403 = vrot.lane.b32.xlu0 %v397, 64
    %v404 = vpop.permute.xlu0 %403
    %405 = vrot.lane.b32.xlu0 %v398, 64
    %v406 = vpop.permute.xlu0 %405
    %407 = vrot.lane.b32.xlu0 %v399, 64
    %v408 = vpop.permute.xlu0 %407
    %vm412 = vcmask 195584
    %v414 = vsel %vm412, %v161, 0
    %v417 = vsel %vm412, %v162, 0
    %419 = vmatprep.subr.mxu0 0.0
    %420 = vmatpush1.msra.mxu0 %v404
    %421 = vmatprep.subr.mxu0 0.0
    %422 = vmatpush1.msra.mxu0 %v406
    %423 = vmatprep.subr.mxu0 0.0
    %424 = vmatpush1.msra.mxu0 %v408
    %425 = vmatprep.subr.mxu0 0.0
    %426 = vmatpush1.msra.mxu0 0.0
    %427 = vmatprep.subr.mxu0 0.0
    %428 = vmatpush1.msra.mxu0 0.0
    %429 = vmatprep.subr.mxu0 0.0
    %430 = vmatpush1.msra.mxu0 0.0
    %431 = vmatprep.subr.mxu0 0.0
    %432 = vmatpush1.msra.mxu0 0.0
    %433 = vmatprep.subr.mxu0 0.0
    %434 = vmatpush1.msra.mxu0 0.0
    %435 = vmatprep.subr.mxu0 0.0
    %436 = vmatpush1.msra.mxu0 0.0
    %437 = vmatprep.subr.mxu0 0.0
    %438 = vmatpush1.msra.mxu0 0.0
    %439 = vmatprep.subr.mxu0 0.0
    %440 = vmatpush1.msra.mxu0 0.0
    %441 = vmatprep.subr.mxu0 0.0
    %442 = vmatpush1.msra.mxu0 0.0
    %443 = vmatprep.subr.mxu0 0.0
    %444 = vmatpush1.msra.mxu0 0.0
    %445 = vmatprep.subr.mxu0 0.0
    %446 = vmatpush1.msra.mxu0 0.0
    %447 = vmatprep.subr.mxu0 0.0
    %448 = vmatpush1.msra.mxu0 0.0
    %449 = vmatprep.subr.mxu0 0.0
    %450 = vmatpush1.msra.mxu0 0.0
    %451 = vmatprep.subr.mxu0 0.0
    %452 = vmatpush1.msra.mxu0 0.0
    %453 = vmatprep.subr.mxu0 0.0
    %454 = vmatpush1.msra.mxu0 0.0
    %455 = vmatprep.subr.mxu0 0.0
    %456 = vmatpush1.msra.mxu0 0.0
    %457 = vmatprep.subr.mxu0 0.0
    %458 = vmatpush1.msra.mxu0 0.0
    %459 = vmatprep.subr.mxu0 0.0
    %460 = vmatpush1.msra.mxu0 0.0
    %461 = vmatprep.subr.mxu0 0.0
    %462 = vmatpush1.msra.mxu0 0.0
    %463 = vmatprep.subr.mxu0 0.0
    %464 = vmatpush1.msra.mxu0 0.0
    %465 = vmatprep.subr.mxu0 0.0
    %466 = vmatpush1.msra.mxu0 0.0
    %467 = vmatprep.subr.mxu0 0.0
    %468 = vmatpush1.msra.mxu0 0.0
    %469 = vmatprep.subr.mxu0 0.0
    %470 = vmatpush1.msra.mxu0 0.0
    %471 = vmatprep.subr.mxu0 0.0
    %472 = vmatpush1.msra.mxu0 0.0
    %473 = vmatprep.subr.mxu0 0.0
    %474 = vmatpush1.msra.mxu0 0.0
    %475 = vmatprep.subr.mxu0 0.0
    %476 = vmatpush1.msra.mxu0 0.0
    %477 = vmatprep.subr.mxu0 0.0
    %478 = vmatpush1.msra.mxu0 0.0
    %479 = vmatprep.subr.mxu0 0.0
    %480 = vmatpush1.msra.mxu0 0.0
    %481 = vmatprep.subr.mxu0 0.0
    %482 = vmatpush1.msra.mxu0 0.0
    %483 = vmatprep.mubr.f32.mxu0 0.0
    %484 = vmatmul.mubr.f32.gmra.mrb[0].mxu0 %v414
    %v485 = vpop.f32.mrb[0].mxu0
    %v486 = vadd.f32 0.0, %v485
    %v487 = vpop.f32.mrb[0].mxu0
    %488 = vmatprep.mubr.f32.mxu0 0.0
    %489 = vmatmul.mubr.f32.gmra.mrb[0].mxu0 %v417
    %v490 = vpop.f32.mrb[0].mxu0
    %v491 = vadd.f32 0.0, %v490
    %v492 = vpop.f32.mrb[0].mxu0
    %493 = vdwg.mxu0
    %497 = vrot.lane.b32.xlu0 %v382, 64
    %v498 = vpop.permute.xlu0 %497
    %499 = vrot.lane.b32.xlu0 %v383, 64
    %v500 = vpop.permute.xlu0 %499
    %501 = vrot.lane.b32.xlu0 %v384, 64
    %v502 = vpop.permute.xlu0 %501
    %506 = vmatprep.subr.mxu0 0.0
    %507 = vmatpush1.msra.mxu0 %v498
    %508 = vmatprep.subr.mxu0 0.0
    %509 = vmatpush1.msra.mxu0 %v500
    %510 = vmatprep.subr.mxu0 0.0
    %511 = vmatpush1.msra.mxu0 %v502
    %512 = vmatprep.subr.mxu0 0.0
    %513 = vmatpush1.msra.mxu0 0.0
    %514 = vmatprep.subr.mxu0 0.0
    %515 = vmatpush1.msra.mxu0 0.0
    %516 = vmatprep.subr.mxu0 0.0
    %517 = vmatpush1.msra.mxu0 0.0
    %518 = vmatprep.subr.mxu0 0.0
    %519 = vmatpush1.msra.mxu0 0.0
    %520 = vmatprep.subr.mxu0 0.0
    %521 = vmatpush1.msra.mxu0 0.0
    %522 = vmatprep.subr.mxu0 0.0
    %523 = vmatpush1.msra.mxu0 0.0
    %524 = vmatprep.subr.mxu0 0.0
    %525 = vmatpush1.msra.mxu0 0.0
    %526 = vmatprep.subr.mxu0 0.0
    %527 = vmatpush1.msra.mxu0 0.0
    %528 = vmatprep.subr.mxu0 0.0
    %529 = vmatpush1.msra.mxu0 0.0
    %530 = vmatprep.subr.mxu0 0.0
    %531 = vmatpush1.msra.mxu0 0.0
    %532 = vmatprep.subr.mxu0 0.0
    %533 = vmatpush1.msra.mxu0 0.0
    %534 = vmatprep.subr.mxu0 0.0
    %535 = vmatpush1.msra.mxu0 0.0
    %536 = vmatprep.subr.mxu0 0.0
    %537 = vmatpush1.msra.mxu0 0.0
    %538 = vmatprep.subr.mxu0 0.0
    %539 = vmatpush1.msra.mxu0 0.0
    %540 = vmatprep.subr.mxu0 0.0
    %541 = vmatpush1.msra.mxu0 0.0
    %542 = vmatprep.subr.mxu0 0.0
    %543 = vmatpush1.msra.mxu0 0.0
    %544 = vmatprep.subr.mxu0 0.0
    %545 = vmatpush1.msra.mxu0 0.0
    %546 = vmatprep.subr.mxu0 0.0
    %547 = vmatpush1.msra.mxu0 0.0
    %548 = vmatprep.subr.mxu0 0.0
    %549 = vmatpush1.msra.mxu0 0.0
    %550 = vmatprep.subr.mxu0 0.0
    %551 = vmatpush1.msra.mxu0 0.0
    %552 = vmatprep.subr.mxu0 0.0
    %553 = vmatpush1.msra.mxu0 0.0
    %554 = vmatprep.subr.mxu0 0.0
    %555 = vmatpush1.msra.mxu0 0.0
    %556 = vmatprep.subr.mxu0 0.0
    %557 = vmatpush1.msra.mxu0 0.0
    %558 = vmatprep.subr.mxu0 0.0
    %559 = vmatpush1.msra.mxu0 0.0
    %560 = vmatprep.subr.mxu0 0.0
    %561 = vmatpush1.msra.mxu0 0.0
    %562 = vmatprep.subr.mxu0 0.0
    %563 = vmatpush1.msra.mxu0 0.0
    %564 = vmatprep.subr.mxu0 0.0
    %565 = vmatpush1.msra.mxu0 0.0
    %566 = vmatprep.subr.mxu0 0.0
    %567 = vmatpush1.msra.mxu0 0.0
    %568 = vmatprep.subr.mxu0 0.0
    %569 = vmatpush1.msra.mxu0 0.0
    %570 = vmatprep.mubr.f32.mxu0 0.0
    %571 = vmatmul.mubr.f32.gmra.mrb[0].mxu0 %v414
    %v572 = vpop.f32.mrb[0].mxu0
    %v573 = vadd.f32 1e-06, %v572
    %v574 = vpop.f32.mrb[0].mxu0
    %575 = vmatprep.mubr.f32.mxu0 0.0
    %576 = vmatmul.mubr.f32.gmra.mrb[0].mxu0 %v417
    %v577 = vpop.f32.mrb[0].mxu0
    %v578 = vadd.f32 1e-06, %v577
    %v579 = vpop.f32.mrb[0].mxu0
    %580 = vdwg.mxu0
    %v581 = vrcp.pop %v573
    %v582 = vmul.f32 %v486, %v581
    %v583 = vrcp.pop %v578
    %v584 = vmul.f32 %v491, %v583
    %v585 = vadd.f32 %v99, %v582
    %v586 = vadd.f32 %v102, %v584
    %v587 = vsel %vm60, %v585, 0.0
    %vm588 = vcmask 257024
    %v589 = vsel %vm588, %v586, 0.0
    %v590 = vadd.f32 %v587, %v589
    %v591 = vrot.slane %v590, 4
    %v592 = vadd.f32 %v590, %v591
    %v593 = vrot.slane %v592, 2
    %v594 = vadd.f32 %v592, %v593
    %v595 = vrot.slane %v594, 1
    %v596 = vadd.f32 %v594, %v595
    %v597 = vrcp.pop 12.0
    %v598 = vmul.f32 %v596, %v597
    %v599 = vsub.f32 %v585, %v598
    %v600 = vsub.f32 %v586, %v598
    %v601 = vmul.f32 %v599, %v599
    %v602 = vmul.f32 %v600, %v600
    %v603 = vsel %vm60, %v601, 0.0
    %v604 = vsel %vm588, %v602, 0.0
    %v605 = vadd.f32 %v603, %v604
    %v606 = vrot.slane %v605, 4
    %v607 = vadd.f32 %v605, %v606
    %v608 = vrot.slane %v607, 2
    %v609 = vadd.f32 %v607, %v608
    %v610 = vrot.slane %v609, 1
    %v611 = vadd.f32 %v609, %v610
    %v612 = vmul.f32 %v611, %v597
    %v613 = vadd.f32 %v612, 1e-05
    %v614 = vrsqrt.pop %v613
    %v615 = vmul.f32 %v599, %v614
    %v616 = vmul.f32 %v600, %v614
    %v617 = vld [vmem:[%s7] sm:$0x1]
    %v619 = vlaneseq
    %v620 = vshrl.u32 %v619, 7
    %v621 = vsub.s32 0, %v620
    %v622 = vrot.slane %v617, %v621
    %v624 = vmul.f32 %v615, %v622
    %v625 = vmul.f32 %v616, %v622
    %v626 = vld [vmem:[%s8] sm:$0x1]
    %v628 = vlaneseq
    %v629 = vshrl.u32 %v628, 7
    %v630 = vsub.s32 0, %v629
    %v631 = vrot.slane %v626, %v630
    %v633 = vadd.f32 %v624, %v631
    %v634 = vadd.f32 %v625, %v631
    %v635 = vmax.f32 %v633, 0.0
    %v636 = vmax.f32 %v634, 0.0
    %v637 = vadd.f32 %v34, %v635
    %v638 = vadd.f32 %v35, %v636
    %639 = vst.msk [vmem:[#allocation2] sm:$0xff] %vm60, %v637
    %640 = vst.msk [vmem:[#allocation2 + $0x8] sm:$0xf] %vm588, %v638
    // Predicated region
    $region38: #{tpu_custom_call.1} parent=1 // pred_check
      _
    $region39: #{tpu_custom_call.1} parent=1 // pred_check_branch
      %642 = sbr.rel (0) target = $region41
    $region40: #{tpu_custom_call.1} parent=1 // pred_region
      %s644 = ssub.s32 256, 256
      %645 = vsyncadd [#allocation3], %s644
      %s646 = sshll.u32 [#allocation2], 4
      %s647 = int_to_ptr.vmem [resolvable:$true] %s646
      %652 = dma.vmem_to_hbm [thread:$0]  %s647, 256, %s9, [#allocation3], 128, 128, 8
    $region41: #{tpu_custom_call.1} parent=1 // pred_fallthru
      _
    // Predicated region
    $region42: #{tpu_custom_call.1} parent=1 // pred_check
      _
    $region43: #{tpu_custom_call.1} parent=1 // pred_check_branch
      %654 = sbr.rel (0) target = $region45
    $region44: #{tpu_custom_call.1} parent=1 // pred_region
      %655 = dma.done [#allocation3], 256
    $region45: #{tpu_custom_call.1} parent=1 // pred_fallthru
      _
    %656 = vsyncpa [#allocation3], 1

</llo_original>
